<compile_context>
chip_gen: v7x
topology: tpu7x:2x2x1
jax: 0.10.0
libtpu: 0.0.40
codegen_flags: <defaults>
</compile_context>

<pallas_src>
import functools
import math

import jax
import jax.numpy as jnp
from jax import lax
from jax.experimental import pallas as pl
from jax.experimental.pallas import tpu as pltpu

EPS = 1e-5
LANE = 128


def _vmem_capacity_bytes():
    try:
        info = pltpu.get_tpu_info()
        cap = getattr(info, "vmem_capacity_bytes", None)
        if cap:
            return int(cap)
    except Exception:
        pass
    return 64 * 1024 * 1024  # conservative default (v7x: 64 MiB per TensorCore)


_VMEM_CAP = _vmem_capacity_bytes()
# Scoped-VMEM limit handed to Mosaic (headroom under the physical capacity):
#   v5e/v6e (128 MiB physical) -> 96 MiB, v7x (64 MiB) -> 48 MiB.
_VMEM_LIMIT = int(min(_VMEM_CAP * 3 // 4, 112 * 1024 * 1024))
# Per-grid-step x-tile size (input-dtype bytes): fat tiles amortize the ~0.35 us fixed
# per-step overhead; smaller target on v7x where physical VMEM is only 64 MiB.
_TILE_BYTES = 8 * 1024 * 1024 if _VMEM_CAP >= 96 * 1024 * 1024 else 4 * 1024 * 1024
# Budget covering double-buffered in/out tiles plus in-kernel f32 temporaries.
_WORK_BUDGET = int(_VMEM_LIMIT * 0.7)


def _pick_tile(total, target, align):
    """Largest divisor of `total` that is a multiple of `align` and <= max(target, align).
    Falls back to `total` itself (a full-extent block is always legal); callers budget-check
    that fallback so it can never blow past the VMEM limit."""
    cap = min(total, max(target, align))
    t = cap - (cap % align)
    while t >= align:
        if total % t == 0:
            return t
        t -= align
    return total


# ----------------------------------------------------------------------------------
# Kernels
# ----------------------------------------------------------------------------------
def _fused_kernel(x_ref, gamma_ref, beta_ref, o_ref):
    """Single-pass BN over a VMEM-resident (N, TC, L) channel slab (1 read + 1 write)."""
    n, tc, l = x_ref.shape
    inv_cnt = 1.0 / float(n * l)

    def _sum_body(i, acc):
        xi = x_ref[i].astype(jnp.float32)                       # (TC, L)
        return acc + jnp.sum(xi, axis=-1, keepdims=True)

    mean = lax.fori_loop(0, n, _sum_body, jnp.zeros((tc, 1), jnp.float32)) * inv_cnt

    def _var_body(i, acc):
        d = x_ref[i].astype(jnp.float32) - mean
        return acc + jnp.sum(d * d, axis=-1, keepdims=True)

    var = lax.fori_loop(0, n, _var_body, jnp.zeros((tc, 1), jnp.float32)) * inv_cnt

    scale = gamma_ref[...].astype(jnp.float32) * lax.rsqrt(var + EPS)   # (TC, 1)
    bias = beta_ref[...].astype(jnp.float32) - mean * scale
    x = x_ref[...].astype(jnp.float32)                                   # (N, TC, L)
    o_ref[...] = (x * scale[None] + bias[None]).astype(o_ref.dtype)


def _stats_kernel(x_ref, shift_ref, sum_ref, sq_ref):
    """Per-channel shifted sum / sum-of-squares.

    x_ref: (TC, TS, 128) tile of the (N, C, S, 128) view.  shift/sum/sq refs are
    lane-dense (TC, 1, 128) rows; the accumulators stay VMEM-resident across the
    (N, S) reduction grid axes, so stores are full-lane (no vst.msk narrow stores)."""
    @pl.when(jnp.logical_and(pl.program_id(2) == 0, pl.program_id(3) == 0))
    def _():
        sum_ref[...] = jnp.zeros_like(sum_ref)
        sq_ref[...] = jnp.zeros_like(sq_ref)

    xc = x_ref[...].astype(jnp.float32) - shift_ref[...]
    sum_ref[...] += jnp.sum(xc, axis=1, keepdims=True)
    sq_ref[...] += jnp.sum(xc * xc, axis=1, keepdims=True)


def _apply_kernel(x_ref, scale_ref, bias_ref, o_ref):
    """out = x * scale + bias; (TC, 1, 128) per-channel rows broadcast over TS sublanes."""
    x = x_ref[...].astype(jnp.float32)
    o_ref[...] = (x * scale_ref[...] + bias_ref[...]).astype(o_ref.dtype)


# ----------------------------------------------------------------------------------
# Execution paths
# ----------------------------------------------------------------------------------
@functools.partial(jax.jit, static_argnames=("tc",))
def _fused_path(x, gamma, beta, *, tc):
    shape = x.shape
    n, c = shape[0], shape[1]
    l = math.prod(shape[2:])
    x3 = x.reshape(n, c, l)                      # free view of the contiguous layout
    g = gamma.reshape(c, 1).astype(jnp.float32)
    b = beta.reshape(c, 1).astype(jnp.float32)

    x_spec = pl.BlockSpec((n, tc, l), lambda cb: (0, cb, 0))
    v_spec = pl.BlockSpec((tc, 1), lambda cb: (cb, 0))
    out = pl.pallas_call(
        _fused_kernel,
        out_shape=jax.ShapeDtypeStruct((n, c, l), x.dtype),
        grid=(c // tc,),
        in_specs=[x_spec, v_spec, v_spec],
        out_specs=x_spec,
        compiler_params=pltpu.CompilerParams(
            dimension_semantics=("parallel",),
            vmem_limit_bytes=_VMEM_LIMIT,
        ),
    )(x3, g, b)
    return out.reshape(shape)


@functools.partial(jax.jit, static_argnames=("tc", "ts", "p"))
def _two_pass_path(x, gamma, beta, *, tc, ts, p):
    shape = x.shape
    n, c = shape[0], shape[1]
    l = math.prod(shape[2:])
    s = l // LANE
    x4 = x.reshape(n, c, s, LANE)                # free view (no transpose, no cast)

    c_tiles, s_tiles = c // tc, s // ts
    n_half = n // p
    cnt = float(n * l)

    # Cheap per-channel shift (first 128 elements of batch item 0) so the
    # E[x^2] - E[x]^2 finalize does not suffer catastrophic cancellation.
    shift = jnp.mean(x4[:1, :, :1, :].astype(jnp.float32), axis=(0, 2, 3))        # (c,)
    shift_b = jnp.broadcast_to(shift[:, None, None], (c, 1, LANE))

    # ---- pass 1: lane-dense per-channel shifted sum & sum-of-squares ---------------
    x_spec1 = pl.BlockSpec((None, tc, ts, LANE),
                           lambda pp, cb, nb, sb: (pp * n_half + nb, cb, sb, 0))
    row_spec1 = pl.BlockSpec((tc, 1, LANE), lambda pp, cb, nb, sb: (cb, 0, 0))
    acc_spec = pl.BlockSpec((None, tc, 1, LANE), lambda pp, cb, nb, sb: (pp, cb, 0, 0))

    sum_p, sq_p = pl.pallas_call(
        _stats_kernel,
        out_shape=(jax.ShapeDtypeStruct((p, c, 1, LANE), jnp.float32),
                   jax.ShapeDtypeStruct((p, c, 1, LANE), jnp.float32)),
        grid=(p, c_tiles, n_half, s_tiles),
        in_specs=[x_spec1, row_spec1],
        out_specs=(acc_spec, acc_spec),
        compiler_params=pltpu.CompilerParams(
            dimension_semantics=("parallel", "parallel", "arbitrary", "arbitrary"),
            vmem_limit_bytes=_VMEM_LIMIT,
        ),
    )(x4, shift_b)

    # ---- tiny (C,)-sized finalize in plain XLA --------------------------------------
    sum_c = jnp.sum(sum_p, axis=(0, 2, 3))
    sq_c = jnp.sum(sq_p, axis=(0, 2, 3))
    mean_rel = sum_c / cnt                                        # mean relative to shift
    var = jnp.maximum(sq_c / cnt - mean_rel * mean_rel, 0.0)      # biased (1/N), as PyTorch
    inv_std = lax.rsqrt(var + EPS)
    scale = gamma.astype(jnp.float32) * inv_std
    bias = beta.astype(jnp.float32) - (shift + mean_rel) * scale
    scale_b = jnp.broadcast_to(scale[:, None, None], (c, 1, LANE))
    bias_b = jnp.broadcast_to(bias[:, None, None], (c, 1, LANE))

    # ---- pass 2: out = x * scale + bias, streamed tile by tile ----------------------
    x_spec2 = pl.BlockSpec((None, tc, ts, LANE), lambda cb, nb, sb: (nb, cb, sb, 0))
    row_spec2 = pl.BlockSpec((tc, 1, LANE), lambda cb, nb, sb: (cb, 0, 0))
    out = pl.pallas_call(
        _apply_kernel,
        out_shape=jax.ShapeDtypeStruct((n, c, s, LANE), x.dtype),
        grid=(c_tiles, n, s_tiles),
        in_specs=[x_spec2, row_spec2, row_spec2],
        out_specs=x_spec2,
        compiler_params=pltpu.CompilerParams(
            dimension_semantics=("parallel", "parallel", "parallel"),
            vmem_limit_bytes=_VMEM_LIMIT,
        ),
        # TODO(synk): add input_output_aliases={0: 0} when callers donate x (in-place
        # normalize; dtype/shape already match) to halve the peak HBM footprint.
    )(x4, scale_b, bias_b)
    return out.reshape(shape)


@jax.jit
def _xla_fallback(x, gamma, beta):
    n, c = x.shape[0], x.shape[1]
    xr = x.reshape(n, c, -1).astype(jnp.float32)
    mean = jnp.mean(xr, axis=(0, 2), keepdims=True)
    var = jnp.mean(jnp.square(xr - mean), axis=(0, 2), keepdims=True)
    y = (xr - mean) * lax.rsqrt(var + EPS)
    y = y * gamma.reshape(1, c, 1).astype(jnp.float32) + beta.reshape(1, c, 1).astype(jnp.float32)
    return y.reshape(x.shape).astype(x.dtype)


def batchnorm4d(x, gamma, beta, force_two_pass=False):
    """Training-mode BatchNorm over (N, C, *spatial): equivalent to PyTorch
    BatchNorm1d(C) applied to x.view(N, C, -1), reshaped back.  Output dtype == input."""
    shape = x.shape
    n, c = int(shape[0]), int(shape[1])
    l = 1
    for d in shape[2:]:
        l *= int(d)
    isz = jnp.dtype(x.dtype).itemsize
    per_elem = 4 * isz + 12          # double-buffered in+out tiles + f32 temporaries

    # ---- fused single-pass path: whole (N, tc, L) channel slab resident in VMEM ----
    if not force_two_pass and l > 0:
        cap_c = _WORK_BUDGET // max(1, n * l * per_elem)
        tc_f = _pick_tile(c, max(1, cap_c), 8)
        if n * tc_f * l * per_elem <= _WORK_BUDGET:
            if c // tc_f < 2:
                t2 = _pick_tile(c, max(8, c // 2), 8)   # expose >=2 grid steps (megacore)
                if t2 < c:
                    tc_f = t2
            return _fused_path(x, gamma, beta, tc=tc_f)

    # ---- two-pass streaming path on the free (N, C, L/128, 128) view ---------------
    if l > 0 and l % LANE == 0:
        s = l // LANE
        target_elems = max(8 * LANE, min(_TILE_BYTES // isz, _WORK_BUDGET // per_elem))
        tc = _pick_tile(c, 32, 8)
        ts = _pick_tile(s, max(8, target_elems // (tc * LANE)), 8)
        if tc * ts * LANE * per_elem <= _WORK_BUDGET:   # guards the ts == s fallback
            c_tiles = c // tc
            p = 2 if (c_tiles < 2 and n >= 2 and n % 2 == 0) else 1
            return _two_pass_path(x, gamma, beta, tc=tc, ts=ts, p=p)

    # TODO(synk): a streamed Pallas path for L % 128 != 0 (or an L with no usable
    # 128-aligned tiling) needs ragged/masked tiles; fall back to plain XLA there.
    return _xla_fallback(x, gamma, beta)


def _reference(x, gamma, beta):
    n, c = x.shape[0], x.shape[1]
    xr = x.reshape(n, c, -1).astype(jnp.float32)
    mean = jnp.mean(xr, axis=(0, 2), keepdims=True)
    var = jnp.mean((xr - mean) ** 2, axis=(0, 2), keepdims=True)
    y = (xr - mean) / jnp.sqrt(var + EPS)
    y = y * gamma.reshape(1, c, 1) + beta.reshape(1, c, 1)
    return y.reshape(x.shape)


if __name__ == "__main__":
    key = jax.random.PRNGKey(0)
    kx, kg, kb = jax.random.split(key, 3)

    N, C = 2, 4
    D1, D2, D3, D4 = 4, 4, 4, 4          # 4-D spatial extent
    x = jax.random.normal(kx, (N, C, D1, D2, D3, D4), dtype=jnp.float32)
    # PyTorch default is gamma=1, beta=0; perturb so the affine path is exercised.
    gamma = 1.0 + 0.1 * jax.random.normal(kg, (C,), dtype=jnp.float32)
    beta = 0.1 * jax.random.normal(kb, (C,), dtype=jnp.float32)

    ref = _reference(x, gamma, beta)

    # Default dispatch (fused single-pass VMEM-resident kernel at this size).
    out = jax.block_until_ready(batchnorm4d(x, gamma, beta))
    assert out.shape == x.shape
    assert out.dtype == x.dtype
    assert float(jnp.max(jnp.abs(out - ref))) < 1e-4

    # Also exercise the tiled, pipelined two-pass streaming path.
    out2 = jax.block_until_ready(batchnorm4d(x, gamma, beta, force_two_pass=True))
    assert float(jnp.max(jnp.abs(out2 - ref))) < 1e-4

    print("KERNEL_OK")
</pallas_src>

<mosaic_0001>
module attributes {stable_mosaic.version = 11 : i64} {
  func.func @_fused_kernel(%arg0: i32, %arg1: memref<2x4x256xf32, #tpu.memory_space<vmem>>, %arg2: memref<4x1xf32, #tpu.memory_space<vmem>>, %arg3: memref<4x1xf32, #tpu.memory_space<vmem>>, %arg4: memref<2x4x256xf32, #tpu.memory_space<vmem>>) attributes {dimension_semantics = [#tpu.dimension_semantics<parallel>], iteration_bounds = array<i64: 1>, scalar_prefetch = 0 : i64, scratch_operands = 0 : i64, tpu.core_type = #tpu.core_type<tc>, window_params = [{transform_indices = @transform_0, window_bounds = array<i64: 2, 4, 256>}, {transform_indices = @transform_1, window_bounds = array<i64: 4, 1>}, {transform_indices = @transform_2, window_bounds = array<i64: 4, 1>}, {transform_indices = @transform_3, window_bounds = array<i64: 2, 4, 256>}]} {
    %cst = arith.constant 0.000000e+00 : f32
    %0 = vector.broadcast %cst : f32 to vector<4x1xf32>
    %c0_i32 = arith.constant 0 : i32
    %c2_i32 = arith.constant 2 : i32
    %1 = arith.addi %c0_i32, %c2_i32 : i32
    %c1_i32 = arith.constant 1 : i32
    %2 = scf.for %arg5 = %c0_i32 to %1 step %c1_i32 iter_args(%arg6 = %0) -> (vector<4x1xf32>)  : i32 {
      %26 = arith.index_cast %arg5 : i32 to index
      %c0_18 = arith.constant 0 : index
      %c0_19 = arith.constant 0 : index
      %27 = vector.load %arg1[%26, %c0_18, %c0_19] : memref<2x4x256xf32, #tpu.memory_space<vmem>>, vector<1x4x256xf32>
      %28 = vector.shape_cast %27 : vector<1x4x256xf32> to vector<4x256xf32>
      %cst_20 = arith.constant dense<0.000000e+00> : vector<4xf32>
      %29 = vector.multi_reduction <add>, %28, %cst_20 [1] : vector<4x256xf32> to vector<4xf32>
      %30 = vector.shape_cast %29 : vector<4xf32> to vector<4x1xf32>
      %31 = arith.addf %arg6, %30 : vector<4x1xf32>
      scf.yield %31 : vector<4x1xf32>
    }
    %c2_i32_0 = arith.constant 2 : i32
    %cst_1 = arith.constant 0.001953125 : f32
    %3 = vector.broadcast %cst_1 : f32 to vector<4x1xf32>
    %4 = arith.mulf %2, %3 : vector<4x1xf32>
    %cst_2 = arith.constant 0.000000e+00 : f32
    %5 = vector.broadcast %cst_2 : f32 to vector<4x1xf32>
    %c0_i32_3 = arith.constant 0 : i32
    %c2_i32_4 = arith.constant 2 : i32
    %6 = arith.addi %c0_i32_3, %c2_i32_4 : i32
    %c1_i32_5 = arith.constant 1 : i32
    %7 = scf.for %arg5 = %c0_i32_3 to %6 step %c1_i32_5 iter_args(%arg6 = %5) -> (vector<4x1xf32>)  : i32 {
      %26 = arith.index_cast %arg5 : i32 to index
      %c0_18 = arith.constant 0 : index
      %c0_19 = arith.constant 0 : index
      %27 = vector.load %arg1[%26, %c0_18, %c0_19] : memref<2x4x256xf32, #tpu.memory_space<vmem>>, vector<1x4x256xf32>
      %28 = vector.shape_cast %27 : vector<1x4x256xf32> to vector<4x256xf32>
      %29 = vector.broadcast %4 : vector<4x1xf32> to vector<4x256xf32>
      %30 = arith.subf %28, %29 : vector<4x256xf32>
      %31 = arith.mulf %30, %30 : vector<4x256xf32>
      %cst_20 = arith.constant dense<0.000000e+00> : vector<4xf32>
      %32 = vector.multi_reduction <add>, %31, %cst_20 [1] : vector<4x256xf32> to vector<4xf32>
      %33 = vector.shape_cast %32 : vector<4xf32> to vector<4x1xf32>
      %34 = arith.addf %arg6, %33 : vector<4x1xf32>
      scf.yield %34 : vector<4x1xf32>
    }
    %c2_i32_6 = arith.constant 2 : i32
    %cst_7 = arith.constant 0.001953125 : f32
    %8 = vector.broadcast %cst_7 : f32 to vector<4x1xf32>
    %9 = arith.mulf %7, %8 : vector<4x1xf32>
    %c0 = arith.constant 0 : index
    %c0_8 = arith.constant 0 : index
    %10 = vector.load %arg2[%c0, %c0_8] : memref<4x1xf32, #tpu.memory_space<vmem>>, vector<4x1xf32>
    %cst_9 = arith.constant 9.99999974E-6 : f32
    %11 = vector.broadcast %cst_9 : f32 to vector<4x1xf32>
    %12 = arith.addf %9, %11 : vector<4x1xf32>
    %13 = math.rsqrt %12 : vector<4x1xf32>
    %14 = arith.mulf %10, %13 : vector<4x1xf32>
    %c0_10 = arith.constant 0 : index
    %c0_11 = arith.constant 0 : index
    %15 = vector.load %arg3[%c0_10, %c0_11] : memref<4x1xf32, #tpu.memory_space<vmem>>, vector<4x1xf32>
    %16 = arith.mulf %4, %14 : vector<4x1xf32>
    %17 = arith.subf %15, %16 : vector<4x1xf32>
    %c0_12 = arith.constant 0 : index
    %c0_13 = arith.constant 0 : index
    %c0_14 = arith.constant 0 : index
    %18 = vector.load %arg1[%c0_12, %c0_13, %c0_14] : memref<2x4x256xf32, #tpu.memory_space<vmem>>, vector<2x4x256xf32>
    %19 = vector.shape_cast %14 : vector<4x1xf32> to vector<1x4x1xf32>
    %20 = vector.broadcast %19 : vector<1x4x1xf32> to vector<2x4x256xf32>
    %21 = arith.mulf %18, %20 : vector<2x4x256xf32>
    %22 = vector.shape_cast %17 : vector<4x1xf32> to vector<1x4x1xf32>
    %23 = vector.broadcast %22 : vector<1x4x1xf32> to vector<2x4x256xf32>
    %24 = arith.addf %21, %23 : vector<2x4x256xf32>
    %c0_15 = arith.constant 0 : index
    %c0_16 = arith.constant 0 : index
    %c0_17 = arith.constant 0 : index
    %25 = vector.load %arg4[%c0_15, %c0_16, %c0_17] : memref<2x4x256xf32, #tpu.memory_space<vmem>>, vector<2x4x256xf32>
    tpu.vector_store %arg4[%c0_15, %c0_16, %c0_17], %24 {strides = array<i32>} : memref<2x4x256xf32, #tpu.memory_space<vmem>>, vector<2x4x256xf32>,
    return
  }
  func.func @transform_0(%arg0: i32) -> (i32, i32, i32) {
    %c0_i32 = arith.constant 0 : i32
    %c0_i32_0 = arith.constant 0 : i32
    %c0_i32_1 = arith.constant 0 : i32
    return %c0_i32, %arg0, %c0_i32_0 : i32, i32, i32
  }
  func.func @transform_1(%arg0: i32) -> (i32, i32) {
    %c0_i32 = arith.constant 0 : i32
    %c0_i32_0 = arith.constant 0 : i32
    return %arg0, %c0_i32 : i32, i32
  }
  func.func @transform_2(%arg0: i32) -> (i32, i32) {
    %c0_i32 = arith.constant 0 : i32
    %c0_i32_0 = arith.constant 0 : i32
    return %arg0, %c0_i32 : i32, i32
  }
  func.func @transform_3(%arg0: i32) -> (i32, i32, i32) {
    %c0_i32 = arith.constant 0 : i32
    %c0_i32_0 = arith.constant 0 : i32
    %c0_i32_1 = arith.constant 0 : i32
    return %c0_i32, %arg0, %c0_i32_0 : i32, i32, i32
  }
}

</mosaic_0001>

<llo_original>
// kernel: _fused_path.1
$region0: #{_fused_path.1}
  #allocation0 [shape = 'u32[]', space=smem, size = 0x4, offset = 0x4, fixed_abs, tag = 'smem constant byte address 0x4 - core index']
  #allocation1 [shape = 'u32[144,128]{1,0:T(1,128)}', space=vmem, size = 0x12000, scoped, tag = 'internal scratch']
  %s0 = inlined_call_operand.vmem [shape: f32[2,4,256], index: 0, kind: input, shape index: {}]
  %s1 = inlined_call_operand.vmem [shape: f32[4,1], index: 1, kind: input, shape index: {}]
  %s2 = inlined_call_operand.vmem [shape: f32[4,1], index: 2, kind: input, shape index: {}]
  %s3 = inlined_call_operand.vmem [shape: f32[2,4,256], index: 3, kind: output, shape index: {}]
  %s4 = sld [smem:[#allocation0]]
  $region36: #{_fused_path.1} parent=0
    _
  %s6 = ssub.s32 1, %s4
  %s7 = scalar_select 0, %s6, %s4
  // Predicated region
  $region2: #{_fused_path.1} parent=0 // pred_check
    _
  $region3: #{_fused_path.1} parent=0 // pred_check_branch
    %9 = sbr.rel (0) target = $region5
  $region4: #{_fused_path.1} parent=0 // pred_region
    _
  $region5: #{_fused_path.1} parent=0 // pred_fallthru
    _
  // Predicated region
  $region6: #{_fused_path.1} parent=0 // pred_check
    _
  $region7: #{_fused_path.1} parent=0 // pred_check_branch
    %11 = sbr.rel (0) target = $region9
  $region8: #{_fused_path.1} parent=0 // pred_region
    _
  $region9: #{_fused_path.1} parent=0 // pred_fallthru
    _
  // Predicated region
  $region10: #{_fused_path.1} parent=0 // pred_check
    _
  $region11: #{_fused_path.1} parent=0 // pred_check_branch
    %13 = sbr.rel (0) target = $region13
  $region12: #{_fused_path.1} parent=0 // pred_region
    _
  $region13: #{_fused_path.1} parent=0 // pred_fallthru
    _
  loop: start=0, step=1, limit=2
  $region14: #{_fused_path.1} parent=0 // loop_pre_header
    _
  $region15: #{_fused_path.1} parent=0 // loop_header
    %s15 = sphi 0, %s19
    %p16 = scmp.ge.s32.totalorder %s15, 2
    %v20 = vphi 0.0, %v34
  $region16: #{_fused_path.1} parent=0 // loop_header_branch
    %18 = sbr.rel (%p16) target = $region20
  $region17: #{_fused_path.1} parent=0 // loop_body
    %s21 = smul.u32 %s15, 2
    %s22 = smul.addr %s21, 4
    %s23 = scalar_lea.vmem %s0, %s22
    %v24 = vld [vmem:[%s23] sm:$0xff]
    %v26 = vcombine.high %v24, %v24
    %vm28 = vcmask 1043456
    %v29 = vsel %vm28, %v24, 0.0
    %v30 = vsel %vm28, %v26, 0.0
    %v31 = vadd.f32 %v29, %v30
    %32 = vadd.xlane.f32.xlu0 %v31
    %v33 = vpop.xlane.xlu0 %32
    %v34 = vadd.f32 %v20, %v33
  $region18: #{_fused_path.1} parent=0 // loop_footer
    %s19 = sadd.s32 1, %s15
  $region19: #{_fused_path.1} parent=0 // loop_footer_branch
    %14 = sbr.rel target = $region15
  $region20: #{_fused_path.1} parent=0 // loop_exit
    _
  %v35 = vmul.f32 %v20, 0.001953125
  loop: start=0, step=1, limit=2
  $region21: #{_fused_path.1} parent=0 // loop_pre_header
    _
  $region22: #{_fused_path.1} parent=0 // loop_header
    %s37 = sphi 0, %s41
    %p38 = scmp.ge.s32.totalorder %s37, 2
    %v42 = vphi 0.0, %v67
  $region23: #{_fused_path.1} parent=0 // loop_header_branch
    %40 = sbr.rel (%p38) target = $region27
  $region24: #{_fused_path.1} parent=0 // loop_body
    %s43 = smul.u32 %s37, 2
    %s44 = smul.addr %s43, 4
    %s45 = scalar_lea.vmem %s0, %s44
    %v46 = vld [vmem:[%s45] sm:$0xff]
    %v49 = vunpack.c.l.s4 839922192
    %v50 = vunpack.c.0.s8 %v49
    %v51 = vlaneseq
    %v52 = vshrl.u32 %v51, 7
    %v53 = vsub.s32 %v50, %v52
    %v54 = vrot.slane %v35, %v53
    %v56 = vsub.f32 %v46, %v54
    %v57 = vmul.f32 %v56, %v56
    %v59 = vcombine.high %v57, %v57
    %vm61 = vcmask 1043456
    %v62 = vsel %vm61, %v57, 0.0
    %v63 = vsel %vm61, %v59, 0.0
    %v64 = vadd.f32 %v62, %v63
    %65 = vadd.xlane.f32.xlu0 %v64
    %v66 = vpop.xlane.xlu0 %65
    %v67 = vadd.f32 %v42, %v66
  $region25: #{_fused_path.1} parent=0 // loop_footer
    %s41 = sadd.s32 1, %s37
  $region26: #{_fused_path.1} parent=0 // loop_footer_branch
    %36 = sbr.rel target = $region22
  $region27: #{_fused_path.1} parent=0 // loop_exit
    _
  %v68 = vmul.f32 %v42, 0.001953125
  %v69 = vld [vmem:[%s1] sm:$0xf]
  %v70 = vadd.f32 %v68, 1e-05
  %v71 = vrsqrt.pop %v70
  %v72 = vmul.f32 %v69, %v71
  %v73 = vld [vmem:[%s2] sm:$0xf]
  %v74 = vmul.f32 %v35, %v72
  %v75 = vsub.f32 %v73, %v74
  %v76 = vld [vmem:[%s0] sm:$0xff]
  %v77 = vld [vmem:[%s0 + $0x8] sm:$0xff]
  %79 = vset.pattern.permute.xlu0 0
  %80 = vperm.xlu0 %79, %v72
  %v81 = vpop.permute.xlu0 %80
  %v83 = vunpack.c.l.s4 839922192
  %v84 = vunpack.c.0.s8 %v83
  %v85 = vlaneseq
  %v86 = vshrl.u32 %v85, 7
  %v87 = vsub.s32 %v84, %v86
  %v88 = vrot.slane %v81, %v87
  %v90 = vmul.f32 %v76, %v88
  %v91 = vmul.f32 %v77, %v88
  %93 = vset.pattern.permute.xlu0 0
  %94 = vperm.xlu0 %93, %v75
  %v95 = vpop.permute.xlu0 %94
  %v97 = vunpack.c.l.s4 839922192
  %v98 = vunpack.c.0.s8 %v97
  %v99 = vlaneseq
  %v100 = vshrl.u32 %v99, 7
  %v101 = vsub.s32 %v98, %v100
  %v102 = vrot.slane %v95, %v101
  %v104 = vadd.f32 %v90, %v102
  %v105 = vadd.f32 %v91, %v102
  %106 = vst [vmem:[%s3] sm:$0xff] %v104
  %107 = vst [vmem:[%s3 + $0x8] sm:$0xff] %v105
  // Predicated region
  $region28: #{_fused_path.1} parent=0 // pred_check
    _
  $region29: #{_fused_path.1} parent=0 // pred_check_branch
    %109 = sbr.rel (0) target = $region31
  $region30: #{_fused_path.1} parent=0 // pred_region
    _
  $region31: #{_fused_path.1} parent=0 // pred_fallthru
    _
  // Predicated region
  $region32: #{_fused_path.1} parent=0 // pred_check
    _
  $region33: #{_fused_path.1} parent=0 // pred_check_branch
    %111 = sbr.rel (0) target = $region35
  $region34: #{_fused_path.1} parent=0 // pred_region
    _
  $region35: #{_fused_path.1} parent=0 // pred_fallthru
    _

</llo_original>
